<compile_context>
chip_gen: v5e
topology: v5e:2x2
jax: 0.10.0
libtpu: 0.0.40
codegen_flags: <defaults>
</compile_context>

<pallas_src>
import functools

import jax
import jax.numpy as jnp
from jax import lax
from jax.experimental import pallas as pl
from jax.experimental.pallas import tpu as pltpu


# ------------------------- fused Pallas kernel -------------------------

def _residual_attention_kernel(x_ref, wqkv_ref, wout_ref, bout_ref, o_ref, *,
                               heads, dim_head):
    """One grid step == one batch element; all heads handled in this step."""
    x = x_ref[...]                                   # (N, D)  f32
    w_qkv = wqkv_ref[...]                            # (D, 3*inner), Q cols pre-scaled
    w_out = wout_ref[...]                            # (inner, D)
    b_out = bout_ref[...]                            # (1, D)

    inner = heads * dim_head
    n, d = x.shape

    # to_qkv (Linear, no bias): single MXU matmul producing q|k|v for all heads.
    qkv = jnp.dot(x, w_qkv, preferred_element_type=jnp.float32)      # (N, 3*inner)
    q = qkv[:, 0 * inner:1 * inner]
    k = qkv[:, 1 * inner:2 * inner]
    v = qkv[:, 2 * inner:3 * inner]

    # Accumulate the output projection head-by-head:
    #   concat_h(out_h) @ w_out == sum_h out_h @ w_out[h*Dh:(h+1)*Dh, :]
    # -> avoids materializing / lane-concatenating the head-merged (N, inner) tensor.
    acc = jnp.zeros((n, d), jnp.float32)
    for h in range(heads):                           # static unroll (heads is small)
        sl = slice(h * dim_head, (h + 1) * dim_head)
        qh, kh, vh = q[:, sl], k[:, sl], v[:, sl]    # (N, Dh)

        # q @ k^T without materializing k.T: contract last axes directly on the MXU.
        dots = lax.dot_general(qh, kh, (((1,), (1,)), ((), ())),
                               preferred_element_type=jnp.float32)   # (N, N)
        dots = dots - jnp.max(dots, axis=-1, keepdims=True)
        e = jnp.exp(dots)
        attn = e * pl.reciprocal(jnp.sum(e, axis=-1, keepdims=True), approx=True)

        out_h = jnp.dot(attn, vh, preferred_element_type=jnp.float32)  # (N, Dh)
        out_h = out_h + vh                           # memory path (BiDfsmnLayer ~= identity)
        acc = acc + jnp.dot(out_h, w_out[sl, :], preferred_element_type=jnp.float32)

    # to_out bias (dropout p=0.0 == identity), then the Residual skip: fn(x) + x.
    o_ref[...] = (acc + b_out + x).astype(o_ref.dtype)


# ------------------------- wrapper -------------------------

def residual_attention_forward(x, params, heads, dim_head):
    """x: (B, N, D) -> (B, N, D) == Attention(x) + x, fully fused in one pallas_call."""
    w_qkv, w_out, b_out = params
    b, n, dim = x.shape
    inner = heads * dim_head

    kernel = functools.partial(_residual_attention_kernel,
                               heads=heads, dim_head=dim_head)
    return pl.pallas_call(
        kernel,
        out_shape=jax.ShapeDtypeStruct((b, n, dim), x.dtype),
        grid=(b,),
        in_specs=[
            pl.BlockSpec((None, n, dim), lambda i: (i, 0, 0)),      # x, per-batch block
            pl.BlockSpec((dim, 3 * inner), lambda i: (0, 0)),       # w_qkv (resident)
            pl.BlockSpec((inner, dim), lambda i: (0, 0)),           # w_out (resident)
            pl.BlockSpec((1, dim), lambda i: (0, 0)),               # b_out (resident)
        ],
        out_specs=pl.BlockSpec((None, n, dim), lambda i: (i, 0, 0)),
        compiler_params=pltpu.CompilerParams(
            dimension_semantics=("parallel",),                      # megacore-shardable
        ),
    )(x, w_qkv, w_out, b_out)


def init_params(key, dim, heads, dim_head):
    inner = heads * dim_head
    k1, k2, k3 = jax.random.split(key, 3)
    # nn.Linear(dim, inner*3, bias=False) — stored as (in, out)
    w_qkv = 0.02 * jax.random.normal(k1, (dim, inner * 3), jnp.float32)
    # nn.Linear(inner, dim) with bias
    w_out = 0.02 * jax.random.normal(k2, (inner, dim), jnp.float32)
    b_out = 0.02 * jax.random.normal(k3, (1, dim), jnp.float32)
    # Fold the attention scale into the Q columns once, at parameter creation
    # (zero runtime cost; removes the per-step (N,N) VPU multiply in the kernel).
    scale = dim ** (-0.5)
    w_qkv = w_qkv.at[:, :inner].multiply(scale)
    return w_qkv, w_out, b_out


# ------------------------- demo -------------------------

if __name__ == "__main__":
    key = jax.random.PRNGKey(0)
    k_x, k_p = jax.random.split(key)

    # small shapes consistent with the module's forward
    B, N, DIM = 2, 16, 32
    HEADS, DIM_HEAD = 4, 16

    x = jax.random.normal(k_x, (B, N, DIM), jnp.float32)
    params = init_params(k_p, DIM, HEADS, DIM_HEAD)

    out = residual_attention_forward(x, params, HEADS, DIM_HEAD)
    out = jax.block_until_ready(out)
    assert out.shape == (B, N, DIM)
    print("KERNEL_OK")
</pallas_src>

<mosaic_0001>
module attributes {stable_mosaic.version = 11 : i64} {
  func.func @_residual_attention_kernel(%arg0: i32, %arg1: memref<1x16x32xf32, #tpu.memory_space<vmem>>, %arg2: memref<32x192xf32, #tpu.memory_space<vmem>>, %arg3: memref<64x32xf32, #tpu.memory_space<vmem>>, %arg4: memref<1x32xf32, #tpu.memory_space<vmem>>, %arg5: memref<1x16x32xf32, #tpu.memory_space<vmem>>) attributes {dimension_semantics = [#tpu.dimension_semantics<parallel>], iteration_bounds = array<i64: 2>, scalar_prefetch = 0 : i64, scratch_operands = 0 : i64, tpu.core_type = #tpu.core_type<tc>, window_params = [{transform_indices = @transform_0, window_bounds = array<i64: 1, 16, 32>}, {pipeline_mode = #tpu.pipeline_mode<synchronous>, transform_indices = @transform_1, window_bounds = array<i64: 32, 192>}, {pipeline_mode = #tpu.pipeline_mode<synchronous>, transform_indices = @transform_2, window_bounds = array<i64: 64, 32>}, {pipeline_mode = #tpu.pipeline_mode<synchronous>, transform_indices = @transform_3, window_bounds = array<i64: 1, 32>}, {transform_indices = @transform_4, window_bounds = array<i64: 1, 16, 32>}]} {
    %c0 = arith.constant 0 : index
    %c0_0 = arith.constant 0 : index
    %c0_1 = arith.constant 0 : index
    %0 = vector.load %arg1[%c0, %c0_0, %c0_1] : memref<1x16x32xf32, #tpu.memory_space<vmem>>, vector<1x16x32xf32>
    %1 = vector.shape_cast %0 : vector<1x16x32xf32> to vector<16x32xf32>
    %c0_2 = arith.constant 0 : index
    %c0_3 = arith.constant 0 : index
    %2 = vector.load %arg2[%c0_2, %c0_3] : memref<32x192xf32, #tpu.memory_space<vmem>>, vector<32x192xf32>
    %c0_4 = arith.constant 0 : index
    %c0_5 = arith.constant 0 : index
    %3 = vector.load %arg3[%c0_4, %c0_5] : memref<64x32xf32, #tpu.memory_space<vmem>>, vector<64x32xf32>
    %c0_6 = arith.constant 0 : index
    %c0_7 = arith.constant 0 : index
    %4 = vector.load %arg4[%c0_6, %c0_7] : memref<1x32xf32, #tpu.memory_space<vmem>>, vector<1x32xf32>
    %cst = arith.constant dense<0.000000e+00> : vector<16x192xf32>
    %5 = tpu.matmul %1, %2, %cst {dimension_numbers = #tpu.dot_dimension_numbers<[1], [0], [0], [1], [0, 0, 1, 1], [], []>} : vector<16x32xf32>, vector<32x192xf32>, vector<16x192xf32> -> vector<16x192xf32>
    %6 = vector.extract_strided_slice %5 {offsets = [0, 0], sizes = [16, 64], strides = [1, 1]} : vector<16x192xf32> to vector<16x64xf32>
    %7 = vector.extract_strided_slice %5 {offsets = [0, 64], sizes = [16, 64], strides = [1, 1]} : vector<16x192xf32> to vector<16x64xf32>
    %8 = vector.extract_strided_slice %5 {offsets = [0, 128], sizes = [16, 64], strides = [1, 1]} : vector<16x192xf32> to vector<16x64xf32>
    %cst_8 = arith.constant 0.000000e+00 : f32
    %9 = vector.broadcast %cst_8 : f32 to vector<16x32xf32>
    %10 = vector.extract_strided_slice %6 {offsets = [0, 0], sizes = [16, 16], strides = [1, 1]} : vector<16x64xf32> to vector<16x16xf32>
    %11 = vector.extract_strided_slice %7 {offsets = [0, 0], sizes = [16, 16], strides = [1, 1]} : vector<16x64xf32> to vector<16x16xf32>
    %12 = vector.extract_strided_slice %8 {offsets = [0, 0], sizes = [16, 16], strides = [1, 1]} : vector<16x64xf32> to vector<16x16xf32>
    %cst_9 = arith.constant dense<0.000000e+00> : vector<16x16xf32>
    %13 = tpu.matmul %10, %11, %cst_9 {dimension_numbers = #tpu.dot_dimension_numbers<[1], [1], [0], [0], [0, 0, 1, 0], [], []>} : vector<16x16xf32>, vector<16x16xf32>, vector<16x16xf32> -> vector<16x16xf32>
    %cst_10 = arith.constant dense<0xFF800000> : vector<16xf32>
    %14 = vector.multi_reduction <maximumf>, %13, %cst_10 [1] : vector<16x16xf32> to vector<16xf32>
    %15 = vector.shape_cast %14 : vector<16xf32> to vector<16x1xf32>
    %16 = vector.broadcast %15 : vector<16x1xf32> to vector<16x16xf32>
    %17 = arith.subf %13, %16 : vector<16x16xf32>
    %18 = math.exp %17 : vector<16x16xf32>
    %cst_11 = arith.constant dense<0.000000e+00> : vector<16xf32>
    %19 = vector.multi_reduction <add>, %18, %cst_11 [1] : vector<16x16xf32> to vector<16xf32>
    %20 = vector.shape_cast %19 : vector<16xf32> to vector<16x1xf32>
    %21 = tpu.reciprocal %20 {approx = true} : vector<16x1xf32> -> vector<16x1xf32>
    %22 = vector.broadcast %21 : vector<16x1xf32> to vector<16x16xf32>
    %23 = arith.mulf %18, %22 : vector<16x16xf32>
    %cst_12 = arith.constant dense<0.000000e+00> : vector<16x16xf32>
    %24 = tpu.matmul %23, %12, %cst_12 {dimension_numbers = #tpu.dot_dimension_numbers<[1], [0], [0], [1], [0, 0, 1, 1], [], []>} : vector<16x16xf32>, vector<16x16xf32>, vector<16x16xf32> -> vector<16x16xf32>
    %25 = arith.addf %24, %12 : vector<16x16xf32>
    %26 = vector.extract_strided_slice %3 {offsets = [0, 0], sizes = [16, 32], strides = [1, 1]} : vector<64x32xf32> to vector<16x32xf32>
    %cst_13 = arith.constant dense<0.000000e+00> : vector<16x32xf32>
    %27 = tpu.matmul %25, %26, %cst_13 {dimension_numbers = #tpu.dot_dimension_numbers<[1], [0], [0], [1], [0, 0, 1, 1], [], []>} : vector<16x16xf32>, vector<16x32xf32>, vector<16x32xf32> -> vector<16x32xf32>
    %28 = arith.addf %9, %27 : vector<16x32xf32>
    %29 = vector.extract_strided_slice %6 {offsets = [0, 16], sizes = [16, 16], strides = [1, 1]} : vector<16x64xf32> to vector<16x16xf32>
    %30 = vector.extract_strided_slice %7 {offsets = [0, 16], sizes = [16, 16], strides = [1, 1]} : vector<16x64xf32> to vector<16x16xf32>
    %31 = vector.extract_strided_slice %8 {offsets = [0, 16], sizes = [16, 16], strides = [1, 1]} : vector<16x64xf32> to vector<16x16xf32>
    %cst_14 = arith.constant dense<0.000000e+00> : vector<16x16xf32>
    %32 = tpu.matmul %29, %30, %cst_14 {dimension_numbers = #tpu.dot_dimension_numbers<[1], [1], [0], [0], [0, 0, 1, 0], [], []>} : vector<16x16xf32>, vector<16x16xf32>, vector<16x16xf32> -> vector<16x16xf32>
    %cst_15 = arith.constant dense<0xFF800000> : vector<16xf32>
    %33 = vector.multi_reduction <maximumf>, %32, %cst_15 [1] : vector<16x16xf32> to vector<16xf32>
    %34 = vector.shape_cast %33 : vector<16xf32> to vector<16x1xf32>
    %35 = vector.broadcast %34 : vector<16x1xf32> to vector<16x16xf32>
    %36 = arith.subf %32, %35 : vector<16x16xf32>
    %37 = math.exp %36 : vector<16x16xf32>
    %cst_16 = arith.constant dense<0.000000e+00> : vector<16xf32>
    %38 = vector.multi_reduction <add>, %37, %cst_16 [1] : vector<16x16xf32> to vector<16xf32>
    %39 = vector.shape_cast %38 : vector<16xf32> to vector<16x1xf32>
    %40 = tpu.reciprocal %39 {approx = true} : vector<16x1xf32> -> vector<16x1xf32>
    %41 = vector.broadcast %40 : vector<16x1xf32> to vector<16x16xf32>
    %42 = arith.mulf %37, %41 : vector<16x16xf32>
    %cst_17 = arith.constant dense<0.000000e+00> : vector<16x16xf32>
    %43 = tpu.matmul %42, %31, %cst_17 {dimension_numbers = #tpu.dot_dimension_numbers<[1], [0], [0], [1], [0, 0, 1, 1], [], []>} : vector<16x16xf32>, vector<16x16xf32>, vector<16x16xf32> -> vector<16x16xf32>
    %44 = arith.addf %43, %31 : vector<16x16xf32>
    %45 = vector.extract_strided_slice %3 {offsets = [16, 0], sizes = [16, 32], strides = [1, 1]} : vector<64x32xf32> to vector<16x32xf32>
    %cst_18 = arith.constant dense<0.000000e+00> : vector<16x32xf32>
    %46 = tpu.matmul %44, %45, %cst_18 {dimension_numbers = #tpu.dot_dimension_numbers<[1], [0], [0], [1], [0, 0, 1, 1], [], []>} : vector<16x16xf32>, vector<16x32xf32>, vector<16x32xf32> -> vector<16x32xf32>
    %47 = arith.addf %28, %46 : vector<16x32xf32>
    %48 = vector.extract_strided_slice %6 {offsets = [0, 32], sizes = [16, 16], strides = [1, 1]} : vector<16x64xf32> to vector<16x16xf32>
    %49 = vector.extract_strided_slice %7 {offsets = [0, 32], sizes = [16, 16], strides = [1, 1]} : vector<16x64xf32> to vector<16x16xf32>
    %50 = vector.extract_strided_slice %8 {offsets = [0, 32], sizes = [16, 16], strides = [1, 1]} : vector<16x64xf32> to vector<16x16xf32>
    %cst_19 = arith.constant dense<0.000000e+00> : vector<16x16xf32>
    %51 = tpu.matmul %48, %49, %cst_19 {dimension_numbers = #tpu.dot_dimension_numbers<[1], [1], [0], [0], [0, 0, 1, 0], [], []>} : vector<16x16xf32>, vector<16x16xf32>, vector<16x16xf32> -> vector<16x16xf32>
    %cst_20 = arith.constant dense<0xFF800000> : vector<16xf32>
    %52 = vector.multi_reduction <maximumf>, %51, %cst_20 [1] : vector<16x16xf32> to vector<16xf32>
    %53 = vector.shape_cast %52 : vector<16xf32> to vector<16x1xf32>
    %54 = vector.broadcast %53 : vector<16x1xf32> to vector<16x16xf32>
    %55 = arith.subf %51, %54 : vector<16x16xf32>
    %56 = math.exp %55 : vector<16x16xf32>
    %cst_21 = arith.constant dense<0.000000e+00> : vector<16xf32>
    %57 = vector.multi_reduction <add>, %56, %cst_21 [1] : vector<16x16xf32> to vector<16xf32>
    %58 = vector.shape_cast %57 : vector<16xf32> to vector<16x1xf32>
    %59 = tpu.reciprocal %58 {approx = true} : vector<16x1xf32> -> vector<16x1xf32>
    %60 = vector.broadcast %59 : vector<16x1xf32> to vector<16x16xf32>
    %61 = arith.mulf %56, %60 : vector<16x16xf32>
    %cst_22 = arith.constant dense<0.000000e+00> : vector<16x16xf32>
    %62 = tpu.matmul %61, %50, %cst_22 {dimension_numbers = #tpu.dot_dimension_numbers<[1], [0], [0], [1], [0, 0, 1, 1], [], []>} : vector<16x16xf32>, vector<16x16xf32>, vector<16x16xf32> -> vector<16x16xf32>
    %63 = arith.addf %62, %50 : vector<16x16xf32>
    %64 = vector.extract_strided_slice %3 {offsets = [32, 0], sizes = [16, 32], strides = [1, 1]} : vector<64x32xf32> to vector<16x32xf32>
    %cst_23 = arith.constant dense<0.000000e+00> : vector<16x32xf32>
    %65 = tpu.matmul %63, %64, %cst_23 {dimension_numbers = #tpu.dot_dimension_numbers<[1], [0], [0], [1], [0, 0, 1, 1], [], []>} : vector<16x16xf32>, vector<16x32xf32>, vector<16x32xf32> -> vector<16x32xf32>
    %66 = arith.addf %47, %65 : vector<16x32xf32>
    %67 = vector.extract_strided_slice %6 {offsets = [0, 48], sizes = [16, 16], strides = [1, 1]} : vector<16x64xf32> to vector<16x16xf32>
    %68 = vector.extract_strided_slice %7 {offsets = [0, 48], sizes = [16, 16], strides = [1, 1]} : vector<16x64xf32> to vector<16x16xf32>
    %69 = vector.extract_strided_slice %8 {offsets = [0, 48], sizes = [16, 16], strides = [1, 1]} : vector<16x64xf32> to vector<16x16xf32>
    %cst_24 = arith.constant dense<0.000000e+00> : vector<16x16xf32>
    %70 = tpu.matmul %67, %68, %cst_24 {dimension_numbers = #tpu.dot_dimension_numbers<[1], [1], [0], [0], [0, 0, 1, 0], [], []>} : vector<16x16xf32>, vector<16x16xf32>, vector<16x16xf32> -> vector<16x16xf32>
    %cst_25 = arith.constant dense<0xFF800000> : vector<16xf32>
    %71 = vector.multi_reduction <maximumf>, %70, %cst_25 [1] : vector<16x16xf32> to vector<16xf32>
    %72 = vector.shape_cast %71 : vector<16xf32> to vector<16x1xf32>
    %73 = vector.broadcast %72 : vector<16x1xf32> to vector<16x16xf32>
    %74 = arith.subf %70, %73 : vector<16x16xf32>
    %75 = math.exp %74 : vector<16x16xf32>
    %cst_26 = arith.constant dense<0.000000e+00> : vector<16xf32>
    %76 = vector.multi_reduction <add>, %75, %cst_26 [1] : vector<16x16xf32> to vector<16xf32>
    %77 = vector.shape_cast %76 : vector<16xf32> to vector<16x1xf32>
    %78 = tpu.reciprocal %77 {approx = true} : vector<16x1xf32> -> vector<16x1xf32>
    %79 = vector.broadcast %78 : vector<16x1xf32> to vector<16x16xf32>
    %80 = arith.mulf %75, %79 : vector<16x16xf32>
    %cst_27 = arith.constant dense<0.000000e+00> : vector<16x16xf32>
    %81 = tpu.matmul %80, %69, %cst_27 {dimension_numbers = #tpu.dot_dimension_numbers<[1], [0], [0], [1], [0, 0, 1, 1], [], []>} : vector<16x16xf32>, vector<16x16xf32>, vector<16x16xf32> -> vector<16x16xf32>
    %82 = arith.addf %81, %69 : vector<16x16xf32>
    %83 = vector.extract_strided_slice %3 {offsets = [48, 0], sizes = [16, 32], strides = [1, 1]} : vector<64x32xf32> to vector<16x32xf32>
    %cst_28 = arith.constant dense<0.000000e+00> : vector<16x32xf32>
    %84 = tpu.matmul %82, %83, %cst_28 {dimension_numbers = #tpu.dot_dimension_numbers<[1], [0], [0], [1], [0, 0, 1, 1], [], []>} : vector<16x16xf32>, vector<16x32xf32>, vector<16x32xf32> -> vector<16x32xf32>
    %85 = arith.addf %66, %84 : vector<16x32xf32>
    %86 = vector.broadcast %4 : vector<1x32xf32> to vector<16x32xf32>
    %87 = arith.addf %85, %86 : vector<16x32xf32>
    %88 = arith.addf %87, %1 : vector<16x32xf32>
    %c0_29 = arith.constant 0 : index
    %c0_30 = arith.constant 0 : index
    %c0_31 = arith.constant 0 : index
    %89 = vector.load %arg5[%c0_29, %c0_30, %c0_31] : memref<1x16x32xf32, #tpu.memory_space<vmem>>, vector<1x16x32xf32>
    %90 = vector.shape_cast %89 : vector<1x16x32xf32> to vector<16x32xf32>
    %91 = vector.shape_cast %88 : vector<16x32xf32> to vector<1x16x32xf32>
    tpu.vector_store %arg5[%c0_29, %c0_30, %c0_31], %91 {strides = array<i32>} : memref<1x16x32xf32, #tpu.memory_space<vmem>>, vector<1x16x32xf32>,
    return
  }
  func.func @transform_0(%arg0: i32) -> (i32, i32, i32) {
    %c0_i32 = arith.constant 0 : i32
    %c0_i32_0 = arith.constant 0 : i32
    %c0_i32_1 = arith.constant 0 : i32
    return %arg0, %c0_i32, %c0_i32_0 : i32, i32, i32
  }
  func.func @transform_1(%arg0: i32) -> (i32, i32) {
    %c0_i32 = arith.constant 0 : i32
    %c0_i32_0 = arith.constant 0 : i32
    %c0_i32_1 = arith.constant 0 : i32
    return %c0_i32, %c0_i32_0 : i32, i32
  }
  func.func @transform_2(%arg0: i32) -> (i32, i32) {
    %c0_i32 = arith.constant 0 : i32
    %c0_i32_0 = arith.constant 0 : i32
    %c0_i32_1 = arith.constant 0 : i32
    return %c0_i32, %c0_i32_0 : i32, i32
  }
  func.func @transform_3(%arg0: i32) -> (i32, i32) {
    %c0_i32 = arith.constant 0 : i32
    %c0_i32_0 = arith.constant 0 : i32
    %c0_i32_1 = arith.constant 0 : i32
    return %c0_i32, %c0_i32_0 : i32, i32
  }
  func.func @transform_4(%arg0: i32) -> (i32, i32, i32) {
    %c0_i32 = arith.constant 0 : i32
    %c0_i32_0 = arith.constant 0 : i32
    %c0_i32_1 = arith.constant 0 : i32
    return %arg0, %c0_i32, %c0_i32_0 : i32, i32, i32
  }
}

</mosaic_0001>

<llo_original>
// kernel: tpu_custom_call.1
$region0: #{tpu_custom_call.1}
  #allocation0 [shape = 'u32[]', space=smem, size = 0x4, offset = 0x4, fixed_abs, tag = 'smem constant byte address 0x4 - core index']
  #allocation1 [shape = 'u32[72,128]{1,0:T(1,128)}', space=vmem, size = 0x9000, scoped, tag = 'internal scratch']
  %s0 = inlined_call_operand.vmem [shape: f32[2,16,32], index: 0, kind: input, shape index: {}]
  %s1 = inlined_call_operand.vmem [shape: f32[32,192], index: 1, kind: input, shape index: {}]
  %s2 = inlined_call_operand.vmem [shape: f32[64,32], index: 2, kind: input, shape index: {}]
  %s3 = inlined_call_operand.vmem [shape: f32[1,32], index: 3, kind: input, shape index: {}]
  %s4 = inlined_call_operand.hbm [shape: f32[2,16,32], index: 4, kind: output, shape index: {}]
  %s5 = sld [smem:[#allocation0]]
  $region49: #{tpu_custom_call.1} parent=0
    _
  %s7 = ssub.s32 1, %s5
  %s8 = scalar_select 0, %s7, %s5
  $region1: #{tpu_custom_call.1} parent=0
    #allocation2 [shape = 'u8[16384]{0}', space=vmem, size = 0x4000, scoped, tag = 'output window, operand 0']
    #allocation3 [shape = 's32[2]{0}', space=sflag, size = 0x8, scoped, tag = 'scoped memory for tpu_custom_call.1']
    %9 = vsyncpa [#allocation3], 0
    %s10 = scalar_lea.sflag [#allocation3], 1
    %11 = vsyncpa %s10, 0
    loop: start=0, step=1, limit=4
    $region2: #{tpu_custom_call.1} parent=1 // loop_pre_header
      _
    $region3: #{tpu_custom_call.1} parent=1 // loop_header
      %s13 = sphi 0, %s17
      %p14 = scmp.ge.s32.totalorder %s13, 4
      %s23 = sphi 0, %s25
      %s26 = sphi 0, %s23
      %s27 = sphi 0, %s26
      %s43 = sphi 0, %s27
      %s47 = sphi 0, %s47
      %s49 = sphi 0, %s47
      %s50 = sphi 0, %s49
      %s64 = sphi 0, %s50
      %s68 = sphi 0, %s68
      %s70 = sphi 0, %s68
      %s71 = sphi 0, %s70
      %s85 = sphi 0, %s71
      %s89 = sphi 0, %s89
      %s91 = sphi 0, %s89
      %s92 = sphi 0, %s91
      %s106 = sphi 0, %s92
      %s112 = sphi 0, %s114
      %s115 = sphi 0, %s112
      %s116 = sphi 0, %s115
      %s132 = sphi 0, %s116
    $region4: #{tpu_custom_call.1} parent=1 // loop_header_branch
      %16 = sbr.rel (%p14) target = $region8
    $region5: #{tpu_custom_call.1} parent=1 // loop_body
      %s18 = ssub.s32 %s13, 1
      %s19 = ssub.s32 %s13, 2
      %s20 = sadd.s32 %s13, 1
      %s21 = ssub.s32 %s13, %s20
      %p22 = scmp.eq.s32.totalorder %s21, 0
      %s24 = sadd.s32 %s23, 1
      %s25 = scalar_select %p22, %s23, %s24
      %p28 = pneg %p22
      %p29 = scmp.eq.s32.totalorder %s13, 1
      %p30 = por %p28, %p29
      %p31 = scmp.ne.s32.totalorder %s23, %s26
      %p32 = scmp.eq.s32.totalorder %s13, 0
      %p33 = por %p31, %p32
      %p34 = scmp.ne.s32.totalorder %s23, %s26
      %p35 = scmp.eq.s32.totalorder %s18, 1
      %p36 = por %p34, %p35
      %p37 = scmp.ne.s32.totalorder %s26, %s27
      %p38 = scmp.eq.s32.totalorder %s18, 0
      %p39 = por %p37, %p38
      %p40 = scmp.ne.s32.totalorder %s26, %s27
      %p41 = scmp.eq.s32.totalorder %s19, 1
      %p42 = por %p40, %p41
      %p44 = scmp.ne.s32.totalorder %s27, %s43
      %p45 = scmp.eq.s32.totalorder %s19, 0
      %p46 = por %p44, %p45
      %s48 = sadd.s32 %s47, 1
      %p51 = scmp.eq.s32.totalorder %s13, 1
      %p52 = scmp.ne.s32.totalorder %s47, %s49
      %p53 = scmp.eq.s32.totalorder %s13, 0
      %p54 = por %p52, %p53
      %p55 = scmp.ne.s32.totalorder %s47, %s49
      %p56 = scmp.eq.s32.totalorder %s18, 1
      %p57 = por %p55, %p56
      %p58 = scmp.ne.s32.totalorder %s49, %s50
      %p59 = scmp.eq.s32.totalorder %s18, 0
      %p60 = por %p58, %p59
      %p61 = scmp.ne.s32.totalorder %s49, %s50
      %p62 = scmp.eq.s32.totalorder %s19, 1
      %p63 = por %p61, %p62
      %p65 = scmp.ne.s32.totalorder %s50, %s64
      %p66 = scmp.eq.s32.totalorder %s19, 0
      %p67 = por %p65, %p66
      %s69 = sadd.s32 %s68, 1
      %p72 = scmp.eq.s32.totalorder %s13, 1
      %p73 = scmp.ne.s32.totalorder %s68, %s70
      %p74 = scmp.eq.s32.totalorder %s13, 0
      %p75 = por %p73, %p74
      %p76 = scmp.ne.s32.totalorder %s68, %s70
      %p77 = scmp.eq.s32.totalorder %s18, 1
      %p78 = por %p76, %p77
      %p79 = scmp.ne.s32.totalorder %s70, %s71
      %p80 = scmp.eq.s32.totalorder %s18, 0
      %p81 = por %p79, %p80
      %p82 = scmp.ne.s32.totalorder %s70, %s71
      %p83 = scmp.eq.s32.totalorder %s19, 1
      %p84 = por %p82, %p83
      %p86 = scmp.ne.s32.totalorder %s71, %s85
      %p87 = scmp.eq.s32.totalorder %s19, 0
      %p88 = por %p86, %p87
      %s90 = sadd.s32 %s89, 1
      %p93 = scmp.eq.s32.totalorder %s13, 1
      %p94 = scmp.ne.s32.totalorder %s89, %s91
      %p95 = scmp.eq.s32.totalorder %s13, 0
      %p96 = por %p94, %p95
      %p97 = scmp.ne.s32.totalorder %s89, %s91
      %p98 = scmp.eq.s32.totalorder %s18, 1
      %p99 = por %p97, %p98
      %p100 = scmp.ne.s32.totalorder %s91, %s92
      %p101 = scmp.eq.s32.totalorder %s18, 0
      %p102 = por %p100, %p101
      %p103 = scmp.ne.s32.totalorder %s91, %s92
      %p104 = scmp.eq.s32.totalorder %s19, 1
      %p105 = por %p103, %p104
      %p107 = scmp.ne.s32.totalorder %s92, %s106
      %p108 = scmp.eq.s32.totalorder %s19, 0
      %p109 = por %p107, %p108
      %s110 = ssub.s32 %s13, %s20
      %p111 = scmp.eq.s32.totalorder %s110, 0
      %s113 = sadd.s32 %s112, 1
      %s114 = scalar_select %p111, %s112, %s113
      %p117 = pneg %p111
      %p118 = scmp.eq.s32.totalorder %s13, 1
      %p119 = por %p117, %p118
      %p120 = scmp.ne.s32.totalorder %s112, %s115
      %p121 = scmp.eq.s32.totalorder %s13, 0
      %p122 = por %p120, %p121
      %p123 = scmp.ne.s32.totalorder %s112, %s115
      %p124 = scmp.eq.s32.totalorder %s18, 1
      %p125 = por %p123, %p124
      %p126 = scmp.ne.s32.totalorder %s115, %s116
      %p127 = scmp.eq.s32.totalorder %s18, 0
      %p128 = por %p126, %p127
      %p129 = scmp.ne.s32.totalorder %s115, %s116
      %p130 = scmp.eq.s32.totalorder %s19, 1
      %p131 = por %p129, %p130
      %p133 = scmp.ne.s32.totalorder %s116, %s132
      %p134 = scmp.eq.s32.totalorder %s19, 0
      %p135 = por %p133, %p134
      %p136 = scmp.le.s32.totalorder 1, %s13
      %p137 = scmp.lt.s32.totalorder %s13, 3
      %p138 = pnand %p136, %p137
      %p139 = pneg %p138
      // Predicated region
      $region9: #{tpu_custom_call.1} parent=5 // pred_check
        _
      $region10: #{tpu_custom_call.1} parent=5 // pred_check_branch
        %141 = sbr.rel (%p138) target = $region12
      $region11: #{tpu_custom_call.1} parent=5 // pred_region
        %s142 = ssub.s32 %s13, 1
        // Predicated region
        $region13: #{tpu_custom_call.1} parent=11 // pred_check
          %p143 = pneg %p60
        $region14: #{tpu_custom_call.1} parent=11 // pred_check_branch
          %145 = sbr.rel (%p143) target = $region16
        $region15: #{tpu_custom_call.1} parent=11 // pred_region
          _
        $region16: #{tpu_custom_call.1} parent=11 // pred_fallthru
          _
        // Predicated region
        $region17: #{tpu_custom_call.1} parent=11 // pred_check
          %p146 = pneg %p81
        $region18: #{tpu_custom_call.1} parent=11 // pred_check_branch
          %148 = sbr.rel (%p146) target = $region20
        $region19: #{tpu_custom_call.1} parent=11 // pred_region
          _
        $region20: #{tpu_custom_call.1} parent=11 // pred_fallthru
          _
        // Predicated region
        $region21: #{tpu_custom_call.1} parent=11 // pred_check
          %p149 = pneg %p102
        $region22: #{tpu_custom_call.1} parent=11 // pred_check_branch
          %151 = sbr.rel (%p149) target = $region24
        $region23: #{tpu_custom_call.1} parent=11 // pred_region
          _
        $region24: #{tpu_custom_call.1} parent=11 // pred_fallthru
          _
      $region12: #{tpu_custom_call.1} parent=5 // pred_fallthru
        _
      %p152 = scmp.lt.s32.totalorder %s13, 2
      // Predicated region
      $region25: #{tpu_custom_call.1} parent=5 // pred_check
        %p153 = pneg %p152
      $region26: #{tpu_custom_call.1} parent=5 // pred_check_branch
        %155 = sbr.rel (%p153) target = $region28
      $region27: #{tpu_custom_call.1} parent=5 // pred_region
        // Predicated region
        $region29: #{tpu_custom_call.1} parent=27 // pred_check
          %p156 = pneg %p33
        $region30: #{tpu_custom_call.1} parent=27 // pred_check_branch
          %158 = sbr.rel (%p156) target = $region32
        $region31: #{tpu_custom_call.1} parent=27 // pred_region
          %p159 = scmp.lt.s32.totalorder %s13, 1
          %s160 = scalar_select %p159, %s13, 1
          %s161 = smul.addr %s160, 2
          %s162 = smul.addr %s161, 8
          %s163 = scalar_lea.vmem %s0, %s162
        $region32: #{tpu_custom_call.1} parent=27 // pred_fallthru
          _
      $region28: #{tpu_custom_call.1} parent=5 // pred_fallthru
        _
      %p164 = scmp.le.s32.totalorder 1, %s13
      %p165 = scmp.lt.s32.totalorder %s13, 3
      %p166 = pnand %p164, %p165
      %p167 = pneg %p166
      // Predicated region
      $region33: #{tpu_custom_call.1} parent=5 // pred_check
        _
      $region34: #{tpu_custom_call.1} parent=5 // pred_check_branch
        %169 = sbr.rel (%p166) target = $region36
      $region35: #{tpu_custom_call.1} parent=5 // pred_region
        %s170 = ssub.s32 %s13, 1
        %p171 = scmp.lt.s32.totalorder %s18, 1
        %s172 = scalar_select %p171, %s18, 1
        %s173 = smul.addr %s172, 2
        %s174 = smul.addr %s173, 8
        %s175 = scalar_lea.vmem %s0, %s174
        %p176 = pneg %p39
        %p177 = pneg %p36
        %p178 = pneg %p60
        %p179 = pneg %p57
        %p180 = pneg %p81
        %p181 = pneg %p78
        %p182 = pneg %p102
        %p183 = pneg %p99
        %p184 = pneg %p128
        %p185 = pneg %p125
        %s186 = sand.u32 %s115, 1
        %s187 = scalar_lea.sflag [#allocation3], %s186
        %s188 = sand.u32 %s115, 1
        %s189 = smul.addr %s188, 16
        %s190 = scalar_lea.vmem [#allocation2], %s189
        %p191 = scmp.lt.s32.totalorder %s18, 1
        %s192 = scalar_select %p191, %s18, 1
        %s193 = smul.addr %s192, 2
        %s194 = smul.addr %s193, 8
        %s195 = scalar_lea.vmem %s0, %s194
        %v196 = vld [vmem:[%s195] sm:$0xff]
        %v197 = vld [vmem:[%s195 + $0x8] sm:$0xff]
        %v198 = vld [vmem:[%s1] sm:$0xff]
        %v199 = vld [vmem:[%s1 + $0x8] sm:$0xff]
        %v200 = vld [vmem:[%s1 + $0x10] sm:$0xff]
        %v201 = vld [vmem:[%s1 + $0x18] sm:$0xff]
        %v202 = vld [vmem:[%s1 + $0x20] sm:$0xff]
        %v203 = vld [vmem:[%s1 + $0x28] sm:$0xff]
        %v204 = vld [vmem:[%s1 + $0x30] sm:$0xff]
        %v205 = vld [vmem:[%s1 + $0x38] sm:$0xff]
        %v206 = vld [vmem:[%s2] sm:$0xff]
        %v207 = vld [vmem:[%s2 + $0x8] sm:$0xff]
        %v208 = vld [vmem:[%s2 + $0x10] sm:$0xff]
        %v209 = vld [vmem:[%s2 + $0x18] sm:$0xff]
        %v210 = vld [vmem:[%s2 + $0x20] sm:$0xff]
        %v211 = vld [vmem:[%s2 + $0x28] sm:$0xff]
        %v212 = vld [vmem:[%s2 + $0x30] sm:$0xff]
        %v213 = vld [vmem:[%s2 + $0x38] sm:$0xff]
        %v214 = vld [vmem:[%s3] sm:$0x1]
        %vm215 = vcmask 261120
        %v217 = vsel %vm215, %v196, 0
        %v220 = vsel %vm215, %v197, 0
        %222 = vmatpush.msra.mxu0 0.0
        %223 = vmatpush.msra.mxu0 0.0
        %224 = vmatpush.msra.mxu0 0.0
        %225 = vmatpush.msra.mxu0 0.0
        %226 = vmatpush.msra.mxu0 0.0
        %227 = vmatpush.msra.mxu0 0.0
        %228 = vmatpush.msra.mxu0 0.0
        %229 = vmatpush.msra.mxu0 0.0
        %230 = vmatpush.msra.mxu0 0.0
        %231 = vmatpush.msra.mxu0 0.0
        %232 = vmatpush.msra.mxu0 0.0
        %233 = vmatpush.msra.mxu0 0.0
        %234 = vmatpush.msra.mxu0 %v204
        %235 = vmatpush.msra.mxu0 %v202
        %236 = vmatpush.msra.mxu0 %v200
        %237 = vmatpush.msra.mxu0 %v198
        %238 = vmatmul.f32.gmra.mxu0 %v217
        %v239 = vpop.f32.mrf.mxu0
        %v240 = vadd.f32 0.0, %v239
        %241 = vmatmul.f32.gmra.mxu0 %v220
        %v242 = vpop.f32.mrf.mxu0
        %v243 = vadd.f32 0.0, %v242
        %244 = vdwg.mxu0
        %245 = vmatpush.msra.mxu0 0.0
        %246 = vmatpush.msra.mxu0 0.0
        %247 = vmatpush.msra.mxu0 0.0
        %248 = vmatpush.msra.mxu0 0.0
        %249 = vmatpush.msra.mxu0 0.0
        %250 = vmatpush.msra.mxu0 0.0
        %251 = vmatpush.msra.mxu0 0.0
        %252 = vmatpush.msra.mxu0 0.0
        %253 = vmatpush.msra.mxu0 0.0
        %254 = vmatpush.msra.mxu0 0.0
        %255 = vmatpush.msra.mxu0 0.0
        %256 = vmatpush.msra.mxu0 0.0
        %257 = vmatpush.msra.mxu0 %v205
        %258 = vmatpush.msra.mxu0 %v203
        %259 = vmatpush.msra.mxu0 %v201
        %260 = vmatpush.msra.mxu0 %v199
        %261 = vmatmul.f32.gmra.mxu0 %v217
        %v262 = vpop.f32.mrf.mxu0
        %v263 = vadd.f32 0.0, %v262
        %264 = vmatmul.f32.gmra.mxu0 %v220
        %v265 = vpop.f32.mrf.mxu0
        %v266 = vadd.f32 0.0, %v265
        %267 = vdwg.mxu0
        %270 = vrot.lane.b32.xlu0 %v240, 64
        %v271 = vpop.permute.xlu0 %270
        %272 = vrot.lane.b32.xlu0 %v243, 64
        %v273 = vpop.permute.xlu0 %272
        %vm274 = vcmask 130048
        %v275 = vsel %vm274, %v240, 0
        %v277 = vsel %vm274, %v243, 0
        %v279 = vsel %vm274, %v271, 0
        %v281 = vsel %vm274, %v273, 0
        %283 = vmatpush.xpose.msra.mxu0 0.0
        %284 = vmatpush.xpose.msra.mxu0 0.0
        %285 = vmatpush.xpose.msra.mxu0 0.0
        %286 = vmatpush.xpose.msra.mxu0 0.0
        %287 = vmatpush.xpose.msra.mxu0 0.0
        %288 = vmatpush.xpose.msra.mxu0 0.0
        %289 = vmatpush.xpose.msra.mxu0 0.0
        %290 = vmatpush.xpose.msra.mxu0 0.0
        %291 = vmatpush.xpose.msra.mxu0 0.0
        %292 = vmatpush.xpose.msra.mxu0 0.0
        %293 = vmatpush.xpose.msra.mxu0 0.0
        %294 = vmatpush.xpose.msra.mxu0 0.0
        %295 = vmatpush.xpose.msra.mxu0 0.0
        %296 = vmatpush.xpose.msra.mxu0 0.0
        %297 = vmatpush.xpose.msra.mxu0 %v281
        %298 = vmatpush.xpose.msra.mxu0 %v279
        %299 = vmatmul.f32.gmra.mxu0 %v275
        %v300 = vpop.f32.mrf.mxu0
        %v301 = vadd.f32 0.0, %v300
        %302 = vmatmul.f32.gmra.mxu0 %v277
        %v303 = vpop.f32.mrf.mxu0
        %v304 = vadd.f32 0.0, %v303
        %305 = vdwg.mxu0
        %v306 = vsel %vm274, %v301, -inf
        %307 = vmax.xlane.f32.xlu0 %v306
        %v308 = vpop.xlane.xlu0 %307
        %v309 = vsel %vm274, %v304, -inf
        %310 = vmax.xlane.f32.xlu0 %v309
        %v311 = vpop.xlane.xlu0 %310
        %v312 = vsub.f32 %v301, %v308
        %v313 = vsub.f32 %v304, %v311
        %v314 = vmul.f32 %v312, 1.442695
        %v315 = vpow.pop %v314
        %v316 = vmul.f32 %v313, 1.442695
        %v317 = vpow.pop %v316
        %v318 = vsel %vm274, %v315, 0.0
        %319 = vadd.xlane.f32.xlu0 %v318
        %v320 = vpop.xlane.xlu0 %319
        %v321 = vsel %vm274, %v317, 0.0
        %322 = vadd.xlane.f32.xlu0 %v321
        %v323 = vpop.xlane.xlu0 %322
        %v324 = vrcp.pop %v320
        %v325 = vrcp.pop %v323
        %v326 = vmul.f32 %v315, %v324
        %v327 = vmul.f32 %v317, %v325
        %v329 = vsel %vm274, %v326, 0
        %v332 = vsel %vm274, %v327, 0
        %334 = vmatpush.msra.mxu0 0.0
        %335 = vmatpush.msra.mxu0 0.0
        %336 = vmatpush.msra.mxu0 0.0
        %337 = vmatpush.msra.mxu0 0.0
        %338 = vmatpush.msra.mxu0 0.0
        %339 = vmatpush.msra.mxu0 0.0
        %340 = vmatpush.msra.mxu0 0.0
        %341 = vmatpush.msra.mxu0 0.0
        %342 = vmatpush.msra.mxu0 0.0
        %343 = vmatpush.msra.mxu0 0.0
        %344 = vmatpush.msra.mxu0 0.0
        %345 = vmatpush.msra.mxu0 0.0
        %346 = vmatpush.msra.mxu0 0.0
        %347 = vmatpush.msra.mxu0 0.0
        %348 = vmatpush.msra.mxu0 %v266
        %349 = vmatpush.msra.mxu0 %v263
        %350 = vmatmul.f32.gmra.mxu0 %v329
        %v351 = vpop.f32.mrf.mxu0
        %v352 = vadd.f32 %v263, %v351
        %353 = vmatmul.f32.gmra.mxu0 %v332
        %v354 = vpop.f32.mrf.mxu0
        %v355 = vadd.f32 %v266, %v354
        %356 = vdwg.mxu0
        %357 = vrot.lane.b32.xlu0 %v240, 112
        %v358 = vpop.permute.xlu0 %357
        %359 = vrot.lane.b32.xlu0 %v243, 112
        %v360 = vpop.permute.xlu0 %359
        %361 = vrot.lane.b32.xlu0 %v240, 48
        %v362 = vpop.permute.xlu0 %361
        %363 = vrot.lane.b32.xlu0 %v243, 48
        %v364 = vpop.permute.xlu0 %363
        %v365 = vsel %vm274, %v358, 0
        %v367 = vsel %vm274, %v360, 0
        %v369 = vsel %vm274, %v362, 0
        %v371 = vsel %vm274, %v364, 0
        %373 = vmatpush.xpose.msra.mxu0 0.0
        %374 = vmatpush.xpose.msra.mxu0 0.0
        %375 = vmatpush.xpose.msra.mxu0 0.0
        %376 = vmatpush.xpose.msra.mxu0 0.0
        %377 = vmatpush.xpose.msra.mxu0 0.0
        %378 = vmatpush.xpose.msra.mxu0 0.0
        %379 = vmatpush.xpose.msra.mxu0 0.0
        %380 = vmatpush.xpose.msra.mxu0 0.0
        %381 = vmatpush.xpose.msra.mxu0 0.0
        %382 = vmatpush.xpose.msra.mxu0 0.0
        %383 = vmatpush.xpose.msra.mxu0 0.0
        %384 = vmatpush.xpose.msra.mxu0 0.0
        %385 = vmatpush.xpose.msra.mxu0 0.0
        %386 = vmatpush.xpose.msra.mxu0 0.0
        %387 = vmatpush.xpose.msra.mxu0 %v371
        %388 = vmatpush.xpose.msra.mxu0 %v369
        %389 = vmatmul.f32.gmra.mxu0 %v365
        %v390 = vpop.f32.mrf.mxu0
        %v391 = vadd.f32 0.0, %v390
        %392 = vmatmul.f32.gmra.mxu0 %v367
        %v393 = vpop.f32.mrf.mxu0
        %v394 = vadd.f32 0.0, %v393
        %395 = vdwg.mxu0
        %v396 = vsel %vm274, %v391, -inf
        %397 = vmax.xlane.f32.xlu0 %v396
        %v398 = vpop.xlane.xlu0 %397
        %v399 = vsel %vm274, %v394, -inf
        %400 = vmax.xlane.f32.xlu0 %v399
        %v401 = vpop.xlane.xlu0 %400
        %v402 = vsub.f32 %v391, %v398
        %v403 = vsub.f32 %v394, %v401
        %v404 = vmul.f32 %v402, 1.442695
        %v405 = vpow.pop %v404
        %v406 = vmul.f32 %v403, 1.442695
        %v407 = vpow.pop %v406
        %v408 = vsel %vm274, %v405, 0.0
        %409 = vadd.xlane.f32.xlu0 %v408
        %v410 = vpop.xlane.xlu0 %409
        %v411 = vsel %vm274, %v407, 0.0
        %412 = vadd.xlane.f32.xlu0 %v411
        %v413 = vpop.xlane.xlu0 %412
        %v414 = vrcp.pop %v410
        %v415 = vrcp.pop %v413
        %v416 = vmul.f32 %v405, %v414
        %v417 = vmul.f32 %v407, %v415
        %420 = vrot.lane.b32.xlu0 %v263, 112
        %v421 = vpop.permute.xlu0 %420
        %422 = vrot.lane.b32.xlu0 %v266, 112
        %v423 = vpop.permute.xlu0 %422
        %v427 = vsel %vm274, %v416, 0
        %v430 = vsel %vm274, %v417, 0
        %432 = vmatpush.msra.mxu0 0.0
        %433 = vmatpush.msra.mxu0 0.0
        %434 = vmatpush.msra.mxu0 0.0
        %435 = vmatpush.msra.mxu0 0.0
        %436 = vmatpush.msra.mxu0 0.0
        %437 = vmatpush.msra.mxu0 0.0
        %438 = vmatpush.msra.mxu0 0.0
        %439 = vmatpush.msra.mxu0 0.0
        %440 = vmatpush.msra.mxu0 0.0
        %441 = vmatpush.msra.mxu0 0.0
        %442 = vmatpush.msra.mxu0 0.0
        %443 = vmatpush.msra.mxu0 0.0
        %444 = vmatpush.msra.mxu0 0.0
        %445 = vmatpush.msra.mxu0 0.0
        %446 = vmatpush.msra.mxu0 %v423
        %447 = vmatpush.msra.mxu0 %v421
        %448 = vmatmul.f32.gmra.mxu0 %v427
        %v449 = vpop.f32.mrf.mxu0
        %v450 = vadd.f32 %v421, %v449
        %451 = vmatmul.f32.gmra.mxu0 %v430
        %v452 = vpop.f32.mrf.mxu0
        %v453 = vadd.f32 %v423, %v452
        %454 = vdwg.mxu0
        %v456 = vsel %vm274, %v450, 0
        %v459 = vsel %vm274, %v453, 0
        %461 = vmatpush.msra.mxu0 0.0
        %462 = vmatpush.msra.mxu0 0.0
        %463 = vmatpush.msra.mxu0 0.0
        %464 = vmatpush.msra.mxu0 0.0
        %465 = vmatpush.msra.mxu0 0.0
        %466 = vmatpush.msra.mxu0 0.0
        %467 = vmatpush.msra.mxu0 0.0
        %468 = vmatpush.msra.mxu0 0.0
        %469 = vmatpush.msra.mxu0 0.0
        %470 = vmatpush.msra.mxu0 0.0
        %471 = vmatpush.msra.mxu0 0.0
        %472 = vmatpush.msra.mxu0 0.0
        %473 = vmatpush.msra.mxu0 0.0
        %474 = vmatpush.msra.mxu0 0.0
        %475 = vmatpush.msra.mxu0 %v209
        %476 = vmatpush.msra.mxu0 %v208
        %477 = vmatmul.f32.gmra.mxu0 %v456
        %v478 = vpop.f32.mrf.mxu0
        %v479 = vadd.f32 0.0, %v478
        %480 = vmatmul.f32.gmra.mxu0 %v459
        %v481 = vpop.f32.mrf.mxu0
        %v482 = vadd.f32 0.0, %v481
        %483 = vdwg.mxu0
        %v485 = vsel %vm274, %v352, 0
        %v488 = vsel %vm274, %v355, 0
        %490 = vmatpush.msra.mxu0 0.0
        %491 = vmatpush.msra.mxu0 0.0
        %492 = vmatpush.msra.mxu0 0.0
        %493 = vmatpush.msra.mxu0 0.0
        %494 = vmatpush.msra.mxu0 0.0
        %495 = vmatpush.msra.mxu0 0.0
        %496 = vmatpush.msra.mxu0 0.0
        %497 = vmatpush.msra.mxu0 0.0
        %498 = vmatpush.msra.mxu0 0.0
        %499 = vmatpush.msra.mxu0 0.0
        %500 = vmatpush.msra.mxu0 0.0
        %501 = vmatpush.msra.mxu0 0.0
        %502 = vmatpush.msra.mxu0 0.0
        %503 = vmatpush.msra.mxu0 0.0
        %504 = vmatpush.msra.mxu0 %v207
        %505 = vmatpush.msra.mxu0 %v206
        %506 = vmatmul.f32.gmra.mxu0 %v485
        %v507 = vpop.f32.mrf.mxu0
        %v508 = vadd.f32 %v479, %v507
        %509 = vmatmul.f32.gmra.mxu0 %v488
        %v510 = vpop.f32.mrf.mxu0
        %v511 = vadd.f32 %v482, %v510
        %512 = vdwg.mxu0
        %513 = vrot.lane.b32.xlu0 %v240, 96
        %v514 = vpop.permute.xlu0 %513
        %515 = vrot.lane.b32.xlu0 %v243, 96
        %v516 = vpop.permute.xlu0 %515
        %517 = vrot.lane.b32.xlu0 %v240, 32
        %v518 = vpop.permute.xlu0 %517
        %519 = vrot.lane.b32.xlu0 %v243, 32
        %v520 = vpop.permute.xlu0 %519
        %v521 = vsel %vm274, %v514, 0
        %v523 = vsel %vm274, %v516, 0
        %v525 = vsel %vm274, %v518, 0
        %v527 = vsel %vm274, %v520, 0
        %529 = vmatpush.xpose.msra.mxu0 0.0
        %530 = vmatpush.xpose.msra.mxu0 0.0
        %531 = vmatpush.xpose.msra.mxu0 0.0
        %532 = vmatpush.xpose.msra.mxu0 0.0
        %533 = vmatpush.xpose.msra.mxu0 0.0
        %534 = vmatpush.xpose.msra.mxu0 0.0
        %535 = vmatpush.xpose.msra.mxu0 0.0
        %536 = vmatpush.xpose.msra.mxu0 0.0
        %537 = vmatpush.xpose.msra.mxu0 0.0
        %538 = vmatpush.xpose.msra.mxu0 0.0
        %539 = vmatpush.xpose.msra.mxu0 0.0
        %540 = vmatpush.xpose.msra.mxu0 0.0
        %541 = vmatpush.xpose.msra.mxu0 0.0
        %542 = vmatpush.xpose.msra.mxu0 0.0
        %543 = vmatpush.xpose.msra.mxu0 %v527
        %544 = vmatpush.xpose.msra.mxu0 %v525
        %545 = vmatmul.f32.gmra.mxu0 %v521
        %v546 = vpop.f32.mrf.mxu0
        %v547 = vadd.f32 0.0, %v546
        %548 = vmatmul.f32.gmra.mxu0 %v523
        %v549 = vpop.f32.mrf.mxu0
        %v550 = vadd.f32 0.0, %v549
        %551 = vdwg.mxu0
        %v552 = vsel %vm274, %v547, -inf
        %553 = vmax.xlane.f32.xlu0 %v552
        %v554 = vpop.xlane.xlu0 %553
        %v555 = vsel %vm274, %v550, -inf
        %556 = vmax.xlane.f32.xlu0 %v555
        %v557 = vpop.xlane.xlu0 %556
        %v558 = vsub.f32 %v547, %v554
        %v559 = vsub.f32 %v550, %v557
        %v560 = vmul.f32 %v558, 1.442695
        %v561 = vpow.pop %v560
        %v562 = vmul.f32 %v559, 1.442695
        %v563 = vpow.pop %v562
        %v564 = vsel %vm274, %v561, 0.0
        %565 = vadd.xlane.f32.xlu0 %v564
        %v566 = vpop.xlane.xlu0 %565
        %v567 = vsel %vm274, %v563, 0.0
        %568 = vadd.xlane.f32.xlu0 %v567
        %v569 = vpop.xlane.xlu0 %568
        %v570 = vrcp.pop %v566
        %v571 = vrcp.pop %v569
        %v572 = vmul.f32 %v561, %v570
        %v573 = vmul.f32 %v563, %v571
        %574 = vrot.lane.b32.xlu0 %v263, 96
        %v575 = vpop.permute.xlu0 %574
        %576 = vrot.lane.b32.xlu0 %v266, 96
        %v577 = vpop.permute.xlu0 %576
        %v581 = vsel %vm274, %v572, 0
        %v584 = vsel %vm274, %v573, 0
        %586 = vmatpush.msra.mxu0 0.0
        %587 = vmatpush.msra.mxu0 0.0
        %588 = vmatpush.msra.mxu0 0.0
        %589 = vmatpush.msra.mxu0 0.0
        %590 = vmatpush.msra.mxu0 0.0
        %591 = vmatpush.msra.mxu0 0.0
        %592 = vmatpush.msra.mxu0 0.0
        %593 = vmatpush.msra.mxu0 0.0
        %594 = vmatpush.msra.mxu0 0.0
        %595 = vmatpush.msra.mxu0 0.0
        %596 = vmatpush.msra.mxu0 0.0
        %597 = vmatpush.msra.mxu0 0.0
        %598 = vmatpush.msra.mxu0 0.0
        %599 = vmatpush.msra.mxu0 0.0
        %600 = vmatpush.msra.mxu0 %v577
        %601 = vmatpush.msra.mxu0 %v575
        %602 = vmatmul.f32.gmra.mxu0 %v581
        %v603 = vpop.f32.mrf.mxu0
        %v604 = vadd.f32 %v575, %v603
        %605 = vmatmul.f32.gmra.mxu0 %v584
        %v606 = vpop.f32.mrf.mxu0
        %v607 = vadd.f32 %v577, %v606
        %608 = vdwg.mxu0
        %v610 = vsel %vm274, %v604, 0
        %v613 = vsel %vm274, %v607, 0
        %615 = vmatpush.msra.mxu0 0.0
        %616 = vmatpush.msra.mxu0 0.0
        %617 = vmatpush.msra.mxu0 0.0
        %618 = vmatpush.msra.mxu0 0.0
        %619 = vmatpush.msra.mxu0 0.0
        %620 = vmatpush.msra.mxu0 0.0
        %621 = vmatpush.msra.mxu0 0.0
        %622 = vmatpush.msra.mxu0 0.0
        %623 = vmatpush.msra.mxu0 0.0
        %624 = vmatpush.msra.mxu0 0.0
        %625 = vmatpush.msra.mxu0 0.0
        %626 = vmatpush.msra.mxu0 0.0
        %627 = vmatpush.msra.mxu0 0.0
        %628 = vmatpush.msra.mxu0 0.0
        %629 = vmatpush.msra.mxu0 %v211
        %630 = vmatpush.msra.mxu0 %v210
        %631 = vmatmul.f32.gmra.mxu0 %v610
        %v632 = vpop.f32.mrf.mxu0
        %v633 = vadd.f32 0.0, %v632
        %634 = vmatmul.f32.gmra.mxu0 %v613
        %v635 = vpop.f32.mrf.mxu0
        %v636 = vadd.f32 0.0, %v635
        %637 = vdwg.mxu0
        %v638 = vadd.f32 %v508, %v633
        %v639 = vadd.f32 %v511, %v636
        %640 = vrot.lane.b32.xlu0 %v240, 80
        %v641 = vpop.permute.xlu0 %640
        %642 = vrot.lane.b32.xlu0 %v243, 80
        %v643 = vpop.permute.xlu0 %642
        %644 = vrot.lane.b32.xlu0 %v240, 16
        %v645 = vpop.permute.xlu0 %644
        %646 = vrot.lane.b32.xlu0 %v243, 16
        %v647 = vpop.permute.xlu0 %646
        %v648 = vsel %vm274, %v641, 0
        %v650 = vsel %vm274, %v643, 0
        %v652 = vsel %vm274, %v645, 0
        %v654 = vsel %vm274, %v647, 0
        %656 = vmatpush.xpose.msra.mxu0 0.0
        %657 = vmatpush.xpose.msra.mxu0 0.0
        %658 = vmatpush.xpose.msra.mxu0 0.0
        %659 = vmatpush.xpose.msra.mxu0 0.0
        %660 = vmatpush.xpose.msra.mxu0 0.0
        %661 = vmatpush.xpose.msra.mxu0 0.0
        %662 = vmatpush.xpose.msra.mxu0 0.0
        %663 = vmatpush.xpose.msra.mxu0 0.0
        %664 = vmatpush.xpose.msra.mxu0 0.0
        %665 = vmatpush.xpose.msra.mxu0 0.0
        %666 = vmatpush.xpose.msra.mxu0 0.0
        %667 = vmatpush.xpose.msra.mxu0 0.0
        %668 = vmatpush.xpose.msra.mxu0 0.0
        %669 = vmatpush.xpose.msra.mxu0 0.0
        %670 = vmatpush.xpose.msra.mxu0 %v654
        %671 = vmatpush.xpose.msra.mxu0 %v652
        %672 = vmatmul.f32.gmra.mxu0 %v648
        %v673 = vpop.f32.mrf.mxu0
        %v674 = vadd.f32 0.0, %v673
        %675 = vmatmul.f32.gmra.mxu0 %v650
        %v676 = vpop.f32.mrf.mxu0
        %v677 = vadd.f32 0.0, %v676
        %678 = vdwg.mxu0
        %v679 = vsel %vm274, %v674, -inf
        %680 = vmax.xlane.f32.xlu0 %v679
        %v681 = vpop.xlane.xlu0 %680
        %v682 = vsel %vm274, %v677, -inf
        %683 = vmax.xlane.f32.xlu0 %v682
        %v684 = vpop.xlane.xlu0 %683
        %v685 = vsub.f32 %v674, %v681
        %v686 = vsub.f32 %v677, %v684
        %v687 = vmul.f32 %v685, 1.442695
        %v688 = vpow.pop %v687
        %v689 = vmul.f32 %v686, 1.442695
        %v690 = vpow.pop %v689
        %v691 = vsel %vm274, %v688, 0.0
        %692 = vadd.xlane.f32.xlu0 %v691
        %v693 = vpop.xlane.xlu0 %692
        %v694 = vsel %vm274, %v690, 0.0
        %695 = vadd.xlane.f32.xlu0 %v694
        %v696 = vpop.xlane.xlu0 %695
        %v697 = vrcp.pop %v693
        %v698 = vrcp.pop %v696
        %v699 = vmul.f32 %v688, %v697
        %v700 = vmul.f32 %v690, %v698
        %701 = vrot.lane.b32.xlu0 %v263, 80
        %v702 = vpop.permute.xlu0 %701
        %703 = vrot.lane.b32.xlu0 %v266, 80
        %v704 = vpop.permute.xlu0 %703
        %v708 = vsel %vm274, %v699, 0
        %v711 = vsel %vm274, %v700, 0
        %713 = vmatpush.msra.mxu0 0.0
        %714 = vmatpush.msra.mxu0 0.0
        %715 = vmatpush.msra.mxu0 0.0
        %716 = vmatpush.msra.mxu0 0.0
        %717 = vmatpush.msra.mxu0 0.0
        %718 = vmatpush.msra.mxu0 0.0
        %719 = vmatpush.msra.mxu0 0.0
        %720 = vmatpush.msra.mxu0 0.0
        %721 = vmatpush.msra.mxu0 0.0
        %722 = vmatpush.msra.mxu0 0.0
        %723 = vmatpush.msra.mxu0 0.0
        %724 = vmatpush.msra.mxu0 0.0
        %725 = vmatpush.msra.mxu0 0.0
        %726 = vmatpush.msra.mxu0 0.0
        %727 = vmatpush.msra.mxu0 %v704
        %728 = vmatpush.msra.mxu0 %v702
        %729 = vmatmul.f32.gmra.mxu0 %v708
        %v730 = vpop.f32.mrf.mxu0
        %v731 = vadd.f32 %v702, %v730
        %732 = vmatmul.f32.gmra.mxu0 %v711
        %v733 = vpop.f32.mrf.mxu0
        %v734 = vadd.f32 %v704, %v733
        %735 = vdwg.mxu0
        %v737 = vsel %vm274, %v731, 0
        %v740 = vsel %vm274, %v734, 0
        %742 = vmatpush.msra.mxu0 0.0
        %743 = vmatpush.msra.mxu0 0.0
        %744 = vmatpush.msra.mxu0 0.0
        %745 = vmatpush.msra.mxu0 0.0
        %746 = vmatpush.msra.mxu0 0.0
        %747 = vmatpush.msra.mxu0 0.0
        %748 = vmatpush.msra.mxu0 0.0
        %749 = vmatpush.msra.mxu0 0.0
        %750 = vmatpush.msra.mxu0 0.0
        %751 = vmatpush.msra.mxu0 0.0
        %752 = vmatpush.msra.mxu0 0.0
        %753 = vmatpush.msra.mxu0 0.0
        %754 = vmatpush.msra.mxu0 0.0
        %755 = vmatpush.msra.mxu0 0.0
        %756 = vmatpush.msra.mxu0 %v213
        %757 = vmatpush.msra.mxu0 %v212
        %758 = vmatmul.f32.gmra.mxu0 %v737
        %v759 = vpop.f32.mrf.mxu0
        %v760 = vadd.f32 0.0, %v759
        %761 = vmatmul.f32.gmra.mxu0 %v740
        %v762 = vpop.f32.mrf.mxu0
        %v763 = vadd.f32 0.0, %v762
        %764 = vdwg.mxu0
        %v765 = vadd.f32 %v638, %v760
        %v766 = vadd.f32 %v639, %v763
        %v768 = vperm.slane %v214, 0
        %v770 = vadd.f32 %v765, %v768
        %v771 = vadd.f32 %v766, %v768
        %v772 = vadd.f32 %v770, %v196
        %v773 = vadd.f32 %v771, %v197
        %774 = vst.msk [vmem:[%s190] sm:$0xff] %vm215, %v772
        %775 = vst.msk [vmem:[%s190 + $0x8] sm:$0xff] %vm215, %v773
        %s776 = sand.u32 %s115, 1
        %s777 = scalar_lea.sflag [#allocation3], %s776
        %s778 = sand.u32 %s115, 1
        %s779 = smul.addr %s778, 16
        %s780 = scalar_lea.vmem [#allocation2], %s779
        // Predicated region
        $region37: #{tpu_custom_call.1} parent=35 // pred_check
          %p781 = pneg %p125
        $region38: #{tpu_custom_call.1} parent=35 // pred_check_branch
          %783 = sbr.rel (%p781) target = $region40
        $region39: #{tpu_custom_call.1} parent=35 // pred_region
          %785 = vsyncadd %s777, 0
          %s786 = smul.addr %s18, 2
          %s787 = smul.addr %s786, 8
          %s788 = scalar_lea.hbm %s4, %s787
          %s789 = sshll.u32 %s780, 4
          %s790 = int_to_ptr.vmem [resolvable:$true] %s789
          %s791 = sshll.u32 %s788, 4
          %s792 = int_to_ptr.hbm [resolvable:$true] %s791
          %797 = dma.vmem_to_hbm [thread:$0]  %s790, 256, %s792, %s777, 128, 128, 8
        $region40: #{tpu_custom_call.1} parent=35 // pred_fallthru
          _
      $region36: #{tpu_custom_call.1} parent=5 // pred_fallthru
        _
      %p798 = scmp.le.s32.totalorder 2, %s13
      // Predicated region
      $region41: #{tpu_custom_call.1} parent=5 // pred_check
        %p799 = pneg %p798
      $region42: #{tpu_custom_call.1} parent=5 // pred_check_branch
        %801 = sbr.rel (%p799) target = $region44
      $region43: #{tpu_custom_call.1} parent=5 // pred_region
        %s802 = ssub.s32 %s13, 2
        // Predicated region
        $region45: #{tpu_custom_call.1} parent=43 // pred_check
          %p803 = pneg %p131
        $region46: #{tpu_custom_call.1} parent=43 // pred_check_branch
          %805 = sbr.rel (%p803) target = $region48
        $region47: #{tpu_custom_call.1} parent=43 // pred_region
          %s806 = sand.u32 %s116, 1
          %s807 = scalar_lea.sflag [#allocation3], %s806
          %s808 = sand.u32 %s116, 1
          %s809 = smul.addr %s808, 16
          %s810 = scalar_lea.vmem [#allocation2], %s809
          %812 = dma.done %s807, 256
        $region48: #{tpu_custom_call.1} parent=43 // pred_fallthru
          _
      $region44: #{tpu_custom_call.1} parent=5 // pred_fallthru
        _
    $region6: #{tpu_custom_call.1} parent=1 // loop_footer
      %s17 = sadd.s32 1, %s13
    $region7: #{tpu_custom_call.1} parent=1 // loop_footer_branch
      %12 = sbr.rel target = $region3
    $region8: #{tpu_custom_call.1} parent=1 // loop_exit
      _
    %813 = vsyncpa [#allocation3], 1
    %s814 = scalar_lea.sflag [#allocation3], 1
    %815 = vsyncpa %s814, 1

</llo_original>
